<compile_context>
chip_gen: v7x
topology: tpu7x:2x2x1
jax: 0.10.0
libtpu: 0.0.40
codegen_flags: <defaults>
</compile_context>

<pallas_src>
import functools

import jax
import jax.numpy as jnp
from jax import lax
from jax.experimental import pallas as pl
from jax.experimental.pallas import tpu as pltpu


def _encoder_c_kernel(m1w_ref, m1b_ref, v1w_ref, v1b_ref, v2w_ref, v2b_ref,
                      cas_ref, mean_ref, std_ref, *, cr):
    """One batch tile.  Batch fills sublanes AND lanes.

    cas_ref            : (3, TR, 128)        VMEM   (TR = tile_batch // 128)
    m1w/v1w/v2w refs   : (out, in)           SMEM   (PyTorch Linear layout)
    m1b/v1b/v2b refs   : (out,)              SMEM
    mean_ref, std_ref  : (U_c_dim, TR, 128)  VMEM
    cr                 : chunk height in sublane rows (static; TR % cr == 0)
    """
    u_dim, in_dim = m1w_ref.shape            # (U_c_dim, 3)
    hid_dim = v1w_ref.shape[0]
    tr = cas_ref.shape[1]
    n_chunks = tr // cr

    # Hoist all (~80) scalar weight/bias SMEM reads out of the chunk loop.
    m1w = [[m1w_ref[c, d] for d in range(in_dim)] for c in range(u_dim)]
    m1b = [m1b_ref[c] for c in range(u_dim)]
    v1w = [[v1w_ref[j, d] for d in range(in_dim)] for j in range(hid_dim)]
    v1b = [v1b_ref[j] for j in range(hid_dim)]
    v2w = [[v2w_ref[c, j] for j in range(hid_dim)] for c in range(u_dim)]
    v2b = [v2b_ref[c] for c in range(u_dim)]

    def chunk(i, carry):
        r0 = i * cr
        if not isinstance(r0, int):
            r0 = pl.multiple_of(r0, cr)
        # Dense (cr, 128) slabs, one per input feature (cast keeps bf16 CAS OK).
        xs = [cas_ref[d, pl.ds(r0, cr), :].astype(jnp.float32)
              for d in range(in_dim)]

        # mean_c = m1(CAS): unrolled VPU FMAs with scalar weights.
        for c in range(u_dim):
            acc = m1b[c] + m1w[c][0] * xs[0]
            for d in range(1, in_dim):
                acc = acc + m1w[c][d] * xs[d]
            mean_ref[c, pl.ds(r0, cr), :] = acc.astype(mean_ref.dtype)

        # h = tanh(v1(CAS))   (tanh -> EUP)
        hs = []
        for j in range(hid_dim):
            acc = v1b[j] + v1w[j][0] * xs[0]
            for d in range(1, in_dim):
                acc = acc + v1w[j][d] * xs[d]
            hs.append(jnp.tanh(acc))

        # std_c = exp(v2(h))  (exp -> EUP)
        for c in range(u_dim):
            acc = v2b[c] + v2w[c][0] * hs[0]
            for j in range(1, hid_dim):
                acc = acc + v2w[c][j] * hs[j]
            std_ref[c, pl.ds(r0, cr), :] = jnp.exp(acc).astype(std_ref.dtype)
        return carry

    if n_chunks == 1:
        chunk(0, None)
    else:
        # Chunked inner loop keeps live intermediates register-resident no
        # matter how large the batch tile is.
        lax.fori_loop(0, n_chunks, chunk, None, unroll=2)


def _round_up(x, m):
    return ((x + m - 1) // m) * m


@functools.partial(jax.jit, static_argnames=("block_b",))
def encoder_c_forward(CAS, m1_w, m1_b, v1_w, v1_b, v2_w, v2_b, *, block_b=32768):
    """CAS: (B, 3); weights in PyTorch Linear layout.  Returns (mean_c, std_c), each (B, U_c_dim)."""
    B, in_dim = CAS.shape
    U = m1_w.shape[0]

    # ---- batch-tile selection ----------------------------------------------
    # Tiles are multiples of 1024 (so tile//128 sublane rows are 8-aligned and
    # the kernel walks whole (8,128) f32 vregs), except tiny batches which use a
    # single short tile.  Big tiles amortize the ~0.35us/step pipeline overhead;
    # large batches are split into >= 2 tiles so both v7x TensorCores get work.
    tb_target = max(1024, _round_up(int(block_b), 1024))
    Bp128 = _round_up(B, 128)
    if Bp128 <= 1024:
        tb = Bp128
    elif Bp128 <= tb_target:
        tb = _round_up(Bp128, 1024)
    else:
        n_tiles = max(2, pl.cdiv(Bp128, tb_target))
        tb = _round_up(pl.cdiv(Bp128, n_tiles), 1024)
    Bp = _round_up(B, tb)
    tr = tb // 128                      # sublane rows per tile
    cr = tr if tr <= 8 else 8           # chunk rows (one full f32 vreg when 8)
    assert tr % cr == 0

    # ---- layout plumbing: batch on (sublane, lane) --------------------------
    # pad -> transpose -> reshape fuses into a single XLA copy; drop entirely if
    # producer/consumer adopt the (features, batch) layout.
    cas_p = CAS if Bp == B else jnp.pad(CAS, ((0, Bp - B), (0, 0)))
    cas_t = cas_p.T.reshape(in_dim, Bp // 128, 128)

    kernel = functools.partial(_encoder_c_kernel, cr=cr)
    smem = pl.BlockSpec(memory_space=pltpu.MemorySpace.SMEM)
    out3d = jax.ShapeDtypeStruct((U, Bp // 128, 128), jnp.float32)

    # Double-buffered VMEM footprint; raise the scoped limit only if a user
    # picked a tile big enough to need it (keeps v5e's 16 MiB default happy).
    vmem_need = 2 * (in_dim + 2 * U) * tb * 4
    cp_kwargs = dict(dimension_semantics=("parallel",))
    if vmem_need > (12 << 20):
        cp_kwargs["vmem_limit_bytes"] = min(vmem_need + (4 << 20), 100 << 20)

    mean_t, std_t = pl.pallas_call(
        kernel,
        out_shape=(out3d, out3d),
        grid_spec=pltpu.PrefetchScalarGridSpec(
            num_scalar_prefetch=0,
            grid=(Bp // tb,),
            in_specs=[smem, smem, smem, smem, smem, smem,
                      pl.BlockSpec((in_dim, tr, 128), lambda i: (0, i, 0))],
            out_specs=[pl.BlockSpec((U, tr, 128), lambda i: (0, i, 0)),
                       pl.BlockSpec((U, tr, 128), lambda i: (0, i, 0))],
        ),
        compiler_params=pltpu.CompilerParams(**cp_kwargs),
    )(m1_w, m1_b, v1_w, v1_b, v2_w, v2_b, cas_t)

    mean_c = mean_t.reshape(U, Bp).T[:B]
    std_c = std_t.reshape(U, Bp).T[:B]
    return mean_c, std_c


if __name__ == "__main__":
    # Small deterministic setup mirroring EncoderC(U_c_dim, num_classes, hid_dim=5)
    U_c_dim = 6
    hid_dim = 5
    num_classes = 4      # constructor arg, unused by forward (kept for parity)
    in_dim = 3           # CAS feature width

    key = jax.random.PRNGKey(0)
    k_cas, k_m1w, k_m1b, k_v1w, k_v1b, k_v2w = jax.random.split(key, 6)

    # PyTorch-style Linear init: U(-1/sqrt(fan_in), 1/sqrt(fan_in))
    b1 = 1.0 / jnp.sqrt(jnp.float32(in_dim))
    m1_w = jax.random.uniform(k_m1w, (U_c_dim, in_dim), minval=-b1, maxval=b1, dtype=jnp.float32)
    m1_b = jax.random.uniform(k_m1b, (U_c_dim,), minval=-b1, maxval=b1, dtype=jnp.float32)
    v1_w = jax.random.uniform(k_v1w, (hid_dim, in_dim), minval=-b1, maxval=b1, dtype=jnp.float32)
    v1_b = jax.random.uniform(k_v1b, (hid_dim,), minval=-b1, maxval=b1, dtype=jnp.float32)
    b2 = 1.0 / jnp.sqrt(jnp.float32(hid_dim))
    v2_w = jax.random.uniform(k_v2w, (U_c_dim, hid_dim), minval=-b2, maxval=b2, dtype=jnp.float32)
    v2_b = jnp.ones((U_c_dim,), dtype=jnp.float32)   # module: self.v2.bias.data.fill_(1.0)

    def reference(CAS):
        mean_r = CAS @ m1_w.T + m1_b[None, :]
        std_r = jnp.exp(jnp.tanh(CAS @ v1_w.T + v1_b[None, :]) @ v2_w.T + v2_b[None, :])
        return mean_r, std_r

    def check(B, **kw):
        CAS = jax.random.normal(jax.random.fold_in(k_cas, B), (B, in_dim), dtype=jnp.float32)
        mean_c, std_c = jax.block_until_ready(
            encoder_c_forward(CAS, m1_w, m1_b, v1_w, v1_b, v2_w, v2_b, **kw))
        mean_r, std_r = reference(CAS)
        assert mean_c.shape == (B, U_c_dim) and std_c.shape == (B, U_c_dim)
        assert jnp.allclose(mean_c, mean_r, atol=1e-4, rtol=1e-4)
        assert jnp.allclose(std_c, std_r, atol=1e-4, rtol=1e-4)
        assert bool(jnp.all(std_c > 0))

    check(8)                      # demo size: single tile, single chunk
    check(2300)                   # single tile, multi-chunk fori_loop + pad path
    check(2300, block_b=1024)     # multi-tile grid (parallel axis) + pad path
    print("KERNEL_OK")
</pallas_src>

<mosaic_0001>
module attributes {stable_mosaic.version = 11 : i64} {
  func.func @_encoder_c_kernel(%arg0: i32, %arg1: memref<6x3xf32, #tpu.memory_space<smem>>, %arg2: memref<6xf32, #tpu.memory_space<smem>>, %arg3: memref<5x3xf32, #tpu.memory_space<smem>>, %arg4: memref<5xf32, #tpu.memory_space<smem>>, %arg5: memref<6x5xf32, #tpu.memory_space<smem>>, %arg6: memref<6xf32, #tpu.memory_space<smem>>, %arg7: memref<3x1x128xf32, #tpu.memory_space<vmem>>, %arg8: memref<6x1x128xf32, #tpu.memory_space<vmem>>, %arg9: memref<6x1x128xf32, #tpu.memory_space<vmem>>) attributes {dimension_semantics = [#tpu.dimension_semantics<parallel>], iteration_bounds = array<i64: 1>, scalar_prefetch = 0 : i64, scratch_operands = 0 : i64, tpu.core_type = #tpu.core_type<tc>, window_params = [{transform_indices = @transform_0, window_bounds = array<i64: 6, 3>}, {transform_indices = @transform_1, window_bounds = array<i64: 6>}, {transform_indices = @transform_2, window_bounds = array<i64: 5, 3>}, {transform_indices = @transform_3, window_bounds = array<i64: 5>}, {transform_indices = @transform_4, window_bounds = array<i64: 6, 5>}, {transform_indices = @transform_5, window_bounds = array<i64: 6>}, {transform_indices = @transform_6, window_bounds = array<i64: 3, 1, 128>}, {transform_indices = @transform_7, window_bounds = array<i64: 6, 1, 128>}, {transform_indices = @transform_8, window_bounds = array<i64: 6, 1, 128>}]} {
    %c0 = arith.constant 0 : index
    %c0_0 = arith.constant 0 : index
    %0 = memref.load %arg1[%c0, %c0_0] : memref<6x3xf32, #tpu.memory_space<smem>>
    %c0_1 = arith.constant 0 : index
    %c1 = arith.constant 1 : index
    %1 = memref.load %arg1[%c0_1, %c1] : memref<6x3xf32, #tpu.memory_space<smem>>
    %c0_2 = arith.constant 0 : index
    %c2 = arith.constant 2 : index
    %2 = memref.load %arg1[%c0_2, %c2] : memref<6x3xf32, #tpu.memory_space<smem>>
    %c1_3 = arith.constant 1 : index
    %c0_4 = arith.constant 0 : index
    %3 = memref.load %arg1[%c1_3, %c0_4] : memref<6x3xf32, #tpu.memory_space<smem>>
    %c1_5 = arith.constant 1 : index
    %c1_6 = arith.constant 1 : index
    %4 = memref.load %arg1[%c1_5, %c1_6] : memref<6x3xf32, #tpu.memory_space<smem>>
    %c1_7 = arith.constant 1 : index
    %c2_8 = arith.constant 2 : index
    %5 = memref.load %arg1[%c1_7, %c2_8] : memref<6x3xf32, #tpu.memory_space<smem>>
    %c2_9 = arith.constant 2 : index
    %c0_10 = arith.constant 0 : index
    %6 = memref.load %arg1[%c2_9, %c0_10] : memref<6x3xf32, #tpu.memory_space<smem>>
    %c2_11 = arith.constant 2 : index
    %c1_12 = arith.constant 1 : index
    %7 = memref.load %arg1[%c2_11, %c1_12] : memref<6x3xf32, #tpu.memory_space<smem>>
    %c2_13 = arith.constant 2 : index
    %c2_14 = arith.constant 2 : index
    %8 = memref.load %arg1[%c2_13, %c2_14] : memref<6x3xf32, #tpu.memory_space<smem>>
    %c3 = arith.constant 3 : index
    %c0_15 = arith.constant 0 : index
    %9 = memref.load %arg1[%c3, %c0_15] : memref<6x3xf32, #tpu.memory_space<smem>>
    %c3_16 = arith.constant 3 : index
    %c1_17 = arith.constant 1 : index
    %10 = memref.load %arg1[%c3_16, %c1_17] : memref<6x3xf32, #tpu.memory_space<smem>>
    %c3_18 = arith.constant 3 : index
    %c2_19 = arith.constant 2 : index
    %11 = memref.load %arg1[%c3_18, %c2_19] : memref<6x3xf32, #tpu.memory_space<smem>>
    %c4 = arith.constant 4 : index
    %c0_20 = arith.constant 0 : index
    %12 = memref.load %arg1[%c4, %c0_20] : memref<6x3xf32, #tpu.memory_space<smem>>
    %c4_21 = arith.constant 4 : index
    %c1_22 = arith.constant 1 : index
    %13 = memref.load %arg1[%c4_21, %c1_22] : memref<6x3xf32, #tpu.memory_space<smem>>
    %c4_23 = arith.constant 4 : index
    %c2_24 = arith.constant 2 : index
    %14 = memref.load %arg1[%c4_23, %c2_24] : memref<6x3xf32, #tpu.memory_space<smem>>
    %c5 = arith.constant 5 : index
    %c0_25 = arith.constant 0 : index
    %15 = memref.load %arg1[%c5, %c0_25] : memref<6x3xf32, #tpu.memory_space<smem>>
    %c5_26 = arith.constant 5 : index
    %c1_27 = arith.constant 1 : index
    %16 = memref.load %arg1[%c5_26, %c1_27] : memref<6x3xf32, #tpu.memory_space<smem>>
    %c5_28 = arith.constant 5 : index
    %c2_29 = arith.constant 2 : index
    %17 = memref.load %arg1[%c5_28, %c2_29] : memref<6x3xf32, #tpu.memory_space<smem>>
    %c0_30 = arith.constant 0 : index
    %18 = memref.load %arg2[%c0_30] : memref<6xf32, #tpu.memory_space<smem>>
    %c1_31 = arith.constant 1 : index
    %19 = memref.load %arg2[%c1_31] : memref<6xf32, #tpu.memory_space<smem>>
    %c2_32 = arith.constant 2 : index
    %20 = memref.load %arg2[%c2_32] : memref<6xf32, #tpu.memory_space<smem>>
    %c3_33 = arith.constant 3 : index
    %21 = memref.load %arg2[%c3_33] : memref<6xf32, #tpu.memory_space<smem>>
    %c4_34 = arith.constant 4 : index
    %22 = memref.load %arg2[%c4_34] : memref<6xf32, #tpu.memory_space<smem>>
    %c5_35 = arith.constant 5 : index
    %23 = memref.load %arg2[%c5_35] : memref<6xf32, #tpu.memory_space<smem>>
    %c0_36 = arith.constant 0 : index
    %c0_37 = arith.constant 0 : index
    %24 = memref.load %arg3[%c0_36, %c0_37] : memref<5x3xf32, #tpu.memory_space<smem>>
    %c0_38 = arith.constant 0 : index
    %c1_39 = arith.constant 1 : index
    %25 = memref.load %arg3[%c0_38, %c1_39] : memref<5x3xf32, #tpu.memory_space<smem>>
    %c0_40 = arith.constant 0 : index
    %c2_41 = arith.constant 2 : index
    %26 = memref.load %arg3[%c0_40, %c2_41] : memref<5x3xf32, #tpu.memory_space<smem>>
    %c1_42 = arith.constant 1 : index
    %c0_43 = arith.constant 0 : index
    %27 = memref.load %arg3[%c1_42, %c0_43] : memref<5x3xf32, #tpu.memory_space<smem>>
    %c1_44 = arith.constant 1 : index
    %c1_45 = arith.constant 1 : index
    %28 = memref.load %arg3[%c1_44, %c1_45] : memref<5x3xf32, #tpu.memory_space<smem>>
    %c1_46 = arith.constant 1 : index
    %c2_47 = arith.constant 2 : index
    %29 = memref.load %arg3[%c1_46, %c2_47] : memref<5x3xf32, #tpu.memory_space<smem>>
    %c2_48 = arith.constant 2 : index
    %c0_49 = arith.constant 0 : index
    %30 = memref.load %arg3[%c2_48, %c0_49] : memref<5x3xf32, #tpu.memory_space<smem>>
    %c2_50 = arith.constant 2 : index
    %c1_51 = arith.constant 1 : index
    %31 = memref.load %arg3[%c2_50, %c1_51] : memref<5x3xf32, #tpu.memory_space<smem>>
    %c2_52 = arith.constant 2 : index
    %c2_53 = arith.constant 2 : index
    %32 = memref.load %arg3[%c2_52, %c2_53] : memref<5x3xf32, #tpu.memory_space<smem>>
    %c3_54 = arith.constant 3 : index
    %c0_55 = arith.constant 0 : index
    %33 = memref.load %arg3[%c3_54, %c0_55] : memref<5x3xf32, #tpu.memory_space<smem>>
    %c3_56 = arith.constant 3 : index
    %c1_57 = arith.constant 1 : index
    %34 = memref.load %arg3[%c3_56, %c1_57] : memref<5x3xf32, #tpu.memory_space<smem>>
    %c3_58 = arith.constant 3 : index
    %c2_59 = arith.constant 2 : index
    %35 = memref.load %arg3[%c3_58, %c2_59] : memref<5x3xf32, #tpu.memory_space<smem>>
    %c4_60 = arith.constant 4 : index
    %c0_61 = arith.constant 0 : index
    %36 = memref.load %arg3[%c4_60, %c0_61] : memref<5x3xf32, #tpu.memory_space<smem>>
    %c4_62 = arith.constant 4 : index
    %c1_63 = arith.constant 1 : index
    %37 = memref.load %arg3[%c4_62, %c1_63] : memref<5x3xf32, #tpu.memory_space<smem>>
    %c4_64 = arith.constant 4 : index
    %c2_65 = arith.constant 2 : index
    %38 = memref.load %arg3[%c4_64, %c2_65] : memref<5x3xf32, #tpu.memory_space<smem>>
    %c0_66 = arith.constant 0 : index
    %39 = memref.load %arg4[%c0_66] : memref<5xf32, #tpu.memory_space<smem>>
    %c1_67 = arith.constant 1 : index
    %40 = memref.load %arg4[%c1_67] : memref<5xf32, #tpu.memory_space<smem>>
    %c2_68 = arith.constant 2 : index
    %41 = memref.load %arg4[%c2_68] : memref<5xf32, #tpu.memory_space<smem>>
    %c3_69 = arith.constant 3 : index
    %42 = memref.load %arg4[%c3_69] : memref<5xf32, #tpu.memory_space<smem>>
    %c4_70 = arith.constant 4 : index
    %43 = memref.load %arg4[%c4_70] : memref<5xf32, #tpu.memory_space<smem>>
    %c0_71 = arith.constant 0 : index
    %c0_72 = arith.constant 0 : index
    %44 = memref.load %arg5[%c0_71, %c0_72] : memref<6x5xf32, #tpu.memory_space<smem>>
    %c0_73 = arith.constant 0 : index
    %c1_74 = arith.constant 1 : index
    %45 = memref.load %arg5[%c0_73, %c1_74] : memref<6x5xf32, #tpu.memory_space<smem>>
    %c0_75 = arith.constant 0 : index
    %c2_76 = arith.constant 2 : index
    %46 = memref.load %arg5[%c0_75, %c2_76] : memref<6x5xf32, #tpu.memory_space<smem>>
    %c0_77 = arith.constant 0 : index
    %c3_78 = arith.constant 3 : index
    %47 = memref.load %arg5[%c0_77, %c3_78] : memref<6x5xf32, #tpu.memory_space<smem>>
    %c0_79 = arith.constant 0 : index
    %c4_80 = arith.constant 4 : index
    %48 = memref.load %arg5[%c0_79, %c4_80] : memref<6x5xf32, #tpu.memory_space<smem>>
    %c1_81 = arith.constant 1 : index
    %c0_82 = arith.constant 0 : index
    %49 = memref.load %arg5[%c1_81, %c0_82] : memref<6x5xf32, #tpu.memory_space<smem>>
    %c1_83 = arith.constant 1 : index
    %c1_84 = arith.constant 1 : index
    %50 = memref.load %arg5[%c1_83, %c1_84] : memref<6x5xf32, #tpu.memory_space<smem>>
    %c1_85 = arith.constant 1 : index
    %c2_86 = arith.constant 2 : index
    %51 = memref.load %arg5[%c1_85, %c2_86] : memref<6x5xf32, #tpu.memory_space<smem>>
    %c1_87 = arith.constant 1 : index
    %c3_88 = arith.constant 3 : index
    %52 = memref.load %arg5[%c1_87, %c3_88] : memref<6x5xf32, #tpu.memory_space<smem>>
    %c1_89 = arith.constant 1 : index
    %c4_90 = arith.constant 4 : index
    %53 = memref.load %arg5[%c1_89, %c4_90] : memref<6x5xf32, #tpu.memory_space<smem>>
    %c2_91 = arith.constant 2 : index
    %c0_92 = arith.constant 0 : index
    %54 = memref.load %arg5[%c2_91, %c0_92] : memref<6x5xf32, #tpu.memory_space<smem>>
    %c2_93 = arith.constant 2 : index
    %c1_94 = arith.constant 1 : index
    %55 = memref.load %arg5[%c2_93, %c1_94] : memref<6x5xf32, #tpu.memory_space<smem>>
    %c2_95 = arith.constant 2 : index
    %c2_96 = arith.constant 2 : index
    %56 = memref.load %arg5[%c2_95, %c2_96] : memref<6x5xf32, #tpu.memory_space<smem>>
    %c2_97 = arith.constant 2 : index
    %c3_98 = arith.constant 3 : index
    %57 = memref.load %arg5[%c2_97, %c3_98] : memref<6x5xf32, #tpu.memory_space<smem>>
    %c2_99 = arith.constant 2 : index
    %c4_100 = arith.constant 4 : index
    %58 = memref.load %arg5[%c2_99, %c4_100] : memref<6x5xf32, #tpu.memory_space<smem>>
    %c3_101 = arith.constant 3 : index
    %c0_102 = arith.constant 0 : index
    %59 = memref.load %arg5[%c3_101, %c0_102] : memref<6x5xf32, #tpu.memory_space<smem>>
    %c3_103 = arith.constant 3 : index
    %c1_104 = arith.constant 1 : index
    %60 = memref.load %arg5[%c3_103, %c1_104] : memref<6x5xf32, #tpu.memory_space<smem>>
    %c3_105 = arith.constant 3 : index
    %c2_106 = arith.constant 2 : index
    %61 = memref.load %arg5[%c3_105, %c2_106] : memref<6x5xf32, #tpu.memory_space<smem>>
    %c3_107 = arith.constant 3 : index
    %c3_108 = arith.constant 3 : index
    %62 = memref.load %arg5[%c3_107, %c3_108] : memref<6x5xf32, #tpu.memory_space<smem>>
    %c3_109 = arith.constant 3 : index
    %c4_110 = arith.constant 4 : index
    %63 = memref.load %arg5[%c3_109, %c4_110] : memref<6x5xf32, #tpu.memory_space<smem>>
    %c4_111 = arith.constant 4 : index
    %c0_112 = arith.constant 0 : index
    %64 = memref.load %arg5[%c4_111, %c0_112] : memref<6x5xf32, #tpu.memory_space<smem>>
    %c4_113 = arith.constant 4 : index
    %c1_114 = arith.constant 1 : index
    %65 = memref.load %arg5[%c4_113, %c1_114] : memref<6x5xf32, #tpu.memory_space<smem>>
    %c4_115 = arith.constant 4 : index
    %c2_116 = arith.constant 2 : index
    %66 = memref.load %arg5[%c4_115, %c2_116] : memref<6x5xf32, #tpu.memory_space<smem>>
    %c4_117 = arith.constant 4 : index
    %c3_118 = arith.constant 3 : index
    %67 = memref.load %arg5[%c4_117, %c3_118] : memref<6x5xf32, #tpu.memory_space<smem>>
    %c4_119 = arith.constant 4 : index
    %c4_120 = arith.constant 4 : index
    %68 = memref.load %arg5[%c4_119, %c4_120] : memref<6x5xf32, #tpu.memory_space<smem>>
    %c5_121 = arith.constant 5 : index
    %c0_122 = arith.constant 0 : index
    %69 = memref.load %arg5[%c5_121, %c0_122] : memref<6x5xf32, #tpu.memory_space<smem>>
    %c5_123 = arith.constant 5 : index
    %c1_124 = arith.constant 1 : index
    %70 = memref.load %arg5[%c5_123, %c1_124] : memref<6x5xf32, #tpu.memory_space<smem>>
    %c5_125 = arith.constant 5 : index
    %c2_126 = arith.constant 2 : index
    %71 = memref.load %arg5[%c5_125, %c2_126] : memref<6x5xf32, #tpu.memory_space<smem>>
    %c5_127 = arith.constant 5 : index
    %c3_128 = arith.constant 3 : index
    %72 = memref.load %arg5[%c5_127, %c3_128] : memref<6x5xf32, #tpu.memory_space<smem>>
    %c5_129 = arith.constant 5 : index
    %c4_130 = arith.constant 4 : index
    %73 = memref.load %arg5[%c5_129, %c4_130] : memref<6x5xf32, #tpu.memory_space<smem>>
    %c0_131 = arith.constant 0 : index
    %74 = memref.load %arg6[%c0_131] : memref<6xf32, #tpu.memory_space<smem>>
    %c1_132 = arith.constant 1 : index
    %75 = memref.load %arg6[%c1_132] : memref<6xf32, #tpu.memory_space<smem>>
    %c2_133 = arith.constant 2 : index
    %76 = memref.load %arg6[%c2_133] : memref<6xf32, #tpu.memory_space<smem>>
    %c3_134 = arith.constant 3 : index
    %77 = memref.load %arg6[%c3_134] : memref<6xf32, #tpu.memory_space<smem>>
    %c4_135 = arith.constant 4 : index
    %78 = memref.load %arg6[%c4_135] : memref<6xf32, #tpu.memory_space<smem>>
    %c5_136 = arith.constant 5 : index
    %79 = memref.load %arg6[%c5_136] : memref<6xf32, #tpu.memory_space<smem>>
    %c0_137 = arith.constant 0 : index
    %c0_138 = arith.constant 0 : index
    %c0_139 = arith.constant 0 : index
    %80 = vector.load %arg7[%c0_137, %c0_138, %c0_139] : memref<3x1x128xf32, #tpu.memory_space<vmem>>, vector<1x1x128xf32>
    %81 = vector.shape_cast %80 : vector<1x1x128xf32> to vector<1x128xf32>
    %c1_140 = arith.constant 1 : index
    %c0_141 = arith.constant 0 : index
    %c0_142 = arith.constant 0 : index
    %82 = vector.load %arg7[%c1_140, %c0_141, %c0_142] : memref<3x1x128xf32, #tpu.memory_space<vmem>>, vector<1x1x128xf32>
    %83 = vector.shape_cast %82 : vector<1x1x128xf32> to vector<1x128xf32>
    %c2_143 = arith.constant 2 : index
    %c0_144 = arith.constant 0 : index
    %c0_145 = arith.constant 0 : index
    %84 = vector.load %arg7[%c2_143, %c0_144, %c0_145] : memref<3x1x128xf32, #tpu.memory_space<vmem>>, vector<1x1x128xf32>
    %85 = vector.shape_cast %84 : vector<1x1x128xf32> to vector<1x128xf32>
    %86 = vector.broadcast %0 : f32 to vector<1x128xf32>
    %87 = arith.mulf %86, %81 : vector<1x128xf32>
    %88 = vector.broadcast %18 : f32 to vector<1x128xf32>
    %89 = arith.addf %88, %87 : vector<1x128xf32>
    %90 = vector.broadcast %1 : f32 to vector<1x128xf32>
    %91 = arith.mulf %90, %83 : vector<1x128xf32>
    %92 = arith.addf %89, %91 : vector<1x128xf32>
    %93 = vector.broadcast %2 : f32 to vector<1x128xf32>
    %94 = arith.mulf %93, %85 : vector<1x128xf32>
    %95 = arith.addf %92, %94 : vector<1x128xf32>
    %c0_146 = arith.constant 0 : index
    %c0_147 = arith.constant 0 : index
    %c0_148 = arith.constant 0 : index
    %96 = vector.load %arg8[%c0_146, %c0_147, %c0_148] : memref<6x1x128xf32, #tpu.memory_space<vmem>>, vector<1x1x128xf32>
    %97 = vector.shape_cast %96 : vector<1x1x128xf32> to vector<1x128xf32>
    %98 = vector.shape_cast %95 : vector<1x128xf32> to vector<1x1x128xf32>
    tpu.vector_store %arg8[%c0_146, %c0_147, %c0_148], %98 {strides = array<i32>} : memref<6x1x128xf32, #tpu.memory_space<vmem>>, vector<1x1x128xf32>,
    %99 = vector.broadcast %3 : f32 to vector<1x128xf32>
    %100 = arith.mulf %99, %81 : vector<1x128xf32>
    %101 = vector.broadcast %19 : f32 to vector<1x128xf32>
    %102 = arith.addf %101, %100 : vector<1x128xf32>
    %103 = vector.broadcast %4 : f32 to vector<1x128xf32>
    %104 = arith.mulf %103, %83 : vector<1x128xf32>
    %105 = arith.addf %102, %104 : vector<1x128xf32>
    %106 = vector.broadcast %5 : f32 to vector<1x128xf32>
    %107 = arith.mulf %106, %85 : vector<1x128xf32>
    %108 = arith.addf %105, %107 : vector<1x128xf32>
    %c1_149 = arith.constant 1 : index
    %c0_150 = arith.constant 0 : index
    %c0_151 = arith.constant 0 : index
    %109 = vector.load %arg8[%c1_149, %c0_150, %c0_151] : memref<6x1x128xf32, #tpu.memory_space<vmem>>, vector<1x1x128xf32>
    %110 = vector.shape_cast %109 : vector<1x1x128xf32> to vector<1x128xf32>
    %111 = vector.shape_cast %108 : vector<1x128xf32> to vector<1x1x128xf32>
    tpu.vector_store %arg8[%c1_149, %c0_150, %c0_151], %111 {strides = array<i32>} : memref<6x1x128xf32, #tpu.memory_space<vmem>>, vector<1x1x128xf32>,
    %112 = vector.broadcast %6 : f32 to vector<1x128xf32>
    %113 = arith.mulf %112, %81 : vector<1x128xf32>
    %114 = vector.broadcast %20 : f32 to vector<1x128xf32>
    %115 = arith.addf %114, %113 : vector<1x128xf32>
    %116 = vector.broadcast %7 : f32 to vector<1x128xf32>
    %117 = arith.mulf %116, %83 : vector<1x128xf32>
    %118 = arith.addf %115, %117 : vector<1x128xf32>
    %119 = vector.broadcast %8 : f32 to vector<1x128xf32>
    %120 = arith.mulf %119, %85 : vector<1x128xf32>
    %121 = arith.addf %118, %120 : vector<1x128xf32>
    %c2_152 = arith.constant 2 : index
    %c0_153 = arith.constant 0 : index
    %c0_154 = arith.constant 0 : index
    %122 = vector.load %arg8[%c2_152, %c0_153, %c0_154] : memref<6x1x128xf32, #tpu.memory_space<vmem>>, vector<1x1x128xf32>
    %123 = vector.shape_cast %122 : vector<1x1x128xf32> to vector<1x128xf32>
    %124 = vector.shape_cast %121 : vector<1x128xf32> to vector<1x1x128xf32>
    tpu.vector_store %arg8[%c2_152, %c0_153, %c0_154], %124 {strides = array<i32>} : memref<6x1x128xf32, #tpu.memory_space<vmem>>, vector<1x1x128xf32>,
    %125 = vector.broadcast %9 : f32 to vector<1x128xf32>
    %126 = arith.mulf %125, %81 : vector<1x128xf32>
    %127 = vector.broadcast %21 : f32 to vector<1x128xf32>
    %128 = arith.addf %127, %126 : vector<1x128xf32>
    %129 = vector.broadcast %10 : f32 to vector<1x128xf32>
    %130 = arith.mulf %129, %83 : vector<1x128xf32>
    %131 = arith.addf %128, %130 : vector<1x128xf32>
    %132 = vector.broadcast %11 : f32 to vector<1x128xf32>
    %133 = arith.mulf %132, %85 : vector<1x128xf32>
    %134 = arith.addf %131, %133 : vector<1x128xf32>
    %c3_155 = arith.constant 3 : index
    %c0_156 = arith.constant 0 : index
    %c0_157 = arith.constant 0 : index
    %135 = vector.load %arg8[%c3_155, %c0_156, %c0_157] : memref<6x1x128xf32, #tpu.memory_space<vmem>>, vector<1x1x128xf32>
    %136 = vector.shape_cast %135 : vector<1x1x128xf32> to vector<1x128xf32>
    %137 = vector.shape_cast %134 : vector<1x128xf32> to vector<1x1x128xf32>
    tpu.vector_store %arg8[%c3_155, %c0_156, %c0_157], %137 {strides = array<i32>} : memref<6x1x128xf32, #tpu.memory_space<vmem>>, vector<1x1x128xf32>,
    %138 = vector.broadcast %12 : f32 to vector<1x128xf32>
    %139 = arith.mulf %138, %81 : vector<1x128xf32>
    %140 = vector.broadcast %22 : f32 to vector<1x128xf32>
    %141 = arith.addf %140, %139 : vector<1x128xf32>
    %142 = vector.broadcast %13 : f32 to vector<1x128xf32>
    %143 = arith.mulf %142, %83 : vector<1x128xf32>
    %144 = arith.addf %141, %143 : vector<1x128xf32>
    %145 = vector.broadcast %14 : f32 to vector<1x128xf32>
    %146 = arith.mulf %145, %85 : vector<1x128xf32>
    %147 = arith.addf %144, %146 : vector<1x128xf32>
    %c4_158 = arith.constant 4 : index
    %c0_159 = arith.constant 0 : index
    %c0_160 = arith.constant 0 : index
    %148 = vector.load %arg8[%c4_158, %c0_159, %c0_160] : memref<6x1x128xf32, #tpu.memory_space<vmem>>, vector<1x1x128xf32>
    %149 = vector.shape_cast %148 : vector<1x1x128xf32> to vector<1x128xf32>
    %150 = vector.shape_cast %147 : vector<1x128xf32> to vector<1x1x128xf32>
    tpu.vector_store %arg8[%c4_158, %c0_159, %c0_160], %150 {strides = array<i32>} : memref<6x1x128xf32, #tpu.memory_space<vmem>>, vector<1x1x128xf32>,
    %151 = vector.broadcast %15 : f32 to vector<1x128xf32>
    %152 = arith.mulf %151, %81 : vector<1x128xf32>
    %153 = vector.broadcast %23 : f32 to vector<1x128xf32>
    %154 = arith.addf %153, %152 : vector<1x128xf32>
    %155 = vector.broadcast %16 : f32 to vector<1x128xf32>
    %156 = arith.mulf %155, %83 : vector<1x128xf32>
    %157 = arith.addf %154, %156 : vector<1x128xf32>
    %158 = vector.broadcast %17 : f32 to vector<1x128xf32>
    %159 = arith.mulf %158, %85 : vector<1x128xf32>
    %160 = arith.addf %157, %159 : vector<1x128xf32>
    %c5_161 = arith.constant 5 : index
    %c0_162 = arith.constant 0 : index
    %c0_163 = arith.constant 0 : index
    %161 = vector.load %arg8[%c5_161, %c0_162, %c0_163] : memref<6x1x128xf32, #tpu.memory_space<vmem>>, vector<1x1x128xf32>
    %162 = vector.shape_cast %161 : vector<1x1x128xf32> to vector<1x128xf32>
    %163 = vector.shape_cast %160 : vector<1x128xf32> to vector<1x1x128xf32>
    tpu.vector_store %arg8[%c5_161, %c0_162, %c0_163], %163 {strides = array<i32>} : memref<6x1x128xf32, #tpu.memory_space<vmem>>, vector<1x1x128xf32>,
    %164 = vector.broadcast %24 : f32 to vector<1x128xf32>
    %165 = arith.mulf %164, %81 : vector<1x128xf32>
    %166 = vector.broadcast %39 : f32 to vector<1x128xf32>
    %167 = arith.addf %166, %165 : vector<1x128xf32>
    %168 = vector.broadcast %25 : f32 to vector<1x128xf32>
    %169 = arith.mulf %168, %83 : vector<1x128xf32>
    %170 = arith.addf %167, %169 : vector<1x128xf32>
    %171 = vector.broadcast %26 : f32 to vector<1x128xf32>
    %172 = arith.mulf %171, %85 : vector<1x128xf32>
    %173 = arith.addf %170, %172 : vector<1x128xf32>
    %174 = math.tanh %173 : vector<1x128xf32>
    %175 = vector.broadcast %27 : f32 to vector<1x128xf32>
    %176 = arith.mulf %175, %81 : vector<1x128xf32>
    %177 = vector.broadcast %40 : f32 to vector<1x128xf32>
    %178 = arith.addf %177, %176 : vector<1x128xf32>
    %179 = vector.broadcast %28 : f32 to vector<1x128xf32>
    %180 = arith.mulf %179, %83 : vector<1x128xf32>
    %181 = arith.addf %178, %180 : vector<1x128xf32>
    %182 = vector.broadcast %29 : f32 to vector<1x128xf32>
    %183 = arith.mulf %182, %85 : vector<1x128xf32>
    %184 = arith.addf %181, %183 : vector<1x128xf32>
    %185 = math.tanh %184 : vector<1x128xf32>
    %186 = vector.broadcast %30 : f32 to vector<1x128xf32>
    %187 = arith.mulf %186, %81 : vector<1x128xf32>
    %188 = vector.broadcast %41 : f32 to vector<1x128xf32>
    %189 = arith.addf %188, %187 : vector<1x128xf32>
    %190 = vector.broadcast %31 : f32 to vector<1x128xf32>
    %191 = arith.mulf %190, %83 : vector<1x128xf32>
    %192 = arith.addf %189, %191 : vector<1x128xf32>
    %193 = vector.broadcast %32 : f32 to vector<1x128xf32>
    %194 = arith.mulf %193, %85 : vector<1x128xf32>
    %195 = arith.addf %192, %194 : vector<1x128xf32>
    %196 = math.tanh %195 : vector<1x128xf32>
    %197 = vector.broadcast %33 : f32 to vector<1x128xf32>
    %198 = arith.mulf %197, %81 : vector<1x128xf32>
    %199 = vector.broadcast %42 : f32 to vector<1x128xf32>
    %200 = arith.addf %199, %198 : vector<1x128xf32>
    %201 = vector.broadcast %34 : f32 to vector<1x128xf32>
    %202 = arith.mulf %201, %83 : vector<1x128xf32>
    %203 = arith.addf %200, %202 : vector<1x128xf32>
    %204 = vector.broadcast %35 : f32 to vector<1x128xf32>
    %205 = arith.mulf %204, %85 : vector<1x128xf32>
    %206 = arith.addf %203, %205 : vector<1x128xf32>
    %207 = math.tanh %206 : vector<1x128xf32>
    %208 = vector.broadcast %36 : f32 to vector<1x128xf32>
    %209 = arith.mulf %208, %81 : vector<1x128xf32>
    %210 = vector.broadcast %43 : f32 to vector<1x128xf32>
    %211 = arith.addf %210, %209 : vector<1x128xf32>
    %212 = vector.broadcast %37 : f32 to vector<1x128xf32>
    %213 = arith.mulf %212, %83 : vector<1x128xf32>
    %214 = arith.addf %211, %213 : vector<1x128xf32>
    %215 = vector.broadcast %38 : f32 to vector<1x128xf32>
    %216 = arith.mulf %215, %85 : vector<1x128xf32>
    %217 = arith.addf %214, %216 : vector<1x128xf32>
    %218 = math.tanh %217 : vector<1x128xf32>
    %219 = vector.broadcast %44 : f32 to vector<1x128xf32>
    %220 = arith.mulf %219, %174 : vector<1x128xf32>
    %221 = vector.broadcast %74 : f32 to vector<1x128xf32>
    %222 = arith.addf %221, %220 : vector<1x128xf32>
    %223 = vector.broadcast %45 : f32 to vector<1x128xf32>
    %224 = arith.mulf %223, %185 : vector<1x128xf32>
    %225 = arith.addf %222, %224 : vector<1x128xf32>
    %226 = vector.broadcast %46 : f32 to vector<1x128xf32>
    %227 = arith.mulf %226, %196 : vector<1x128xf32>
    %228 = arith.addf %225, %227 : vector<1x128xf32>
    %229 = vector.broadcast %47 : f32 to vector<1x128xf32>
    %230 = arith.mulf %229, %207 : vector<1x128xf32>
    %231 = arith.addf %228, %230 : vector<1x128xf32>
    %232 = vector.broadcast %48 : f32 to vector<1x128xf32>
    %233 = arith.mulf %232, %218 : vector<1x128xf32>
    %234 = arith.addf %231, %233 : vector<1x128xf32>
    %235 = math.exp %234 : vector<1x128xf32>
    %c0_164 = arith.constant 0 : index
    %c0_165 = arith.constant 0 : index
    %c0_166 = arith.constant 0 : index
    %236 = vector.load %arg9[%c0_164, %c0_165, %c0_166] : memref<6x1x128xf32, #tpu.memory_space<vmem>>, vector<1x1x128xf32>
    %237 = vector.shape_cast %236 : vector<1x1x128xf32> to vector<1x128xf32>
    %238 = vector.shape_cast %235 : vector<1x128xf32> to vector<1x1x128xf32>
    tpu.vector_store %arg9[%c0_164, %c0_165, %c0_166], %238 {strides = array<i32>} : memref<6x1x128xf32, #tpu.memory_space<vmem>>, vector<1x1x128xf32>,
    %239 = vector.broadcast %49 : f32 to vector<1x128xf32>
    %240 = arith.mulf %239, %174 : vector<1x128xf32>
    %241 = vector.broadcast %75 : f32 to vector<1x128xf32>
    %242 = arith.addf %241, %240 : vector<1x128xf32>
    %243 = vector.broadcast %50 : f32 to vector<1x128xf32>
    %244 = arith.mulf %243, %185 : vector<1x128xf32>
    %245 = arith.addf %242, %244 : vector<1x128xf32>
    %246 = vector.broadcast %51 : f32 to vector<1x128xf32>
    %247 = arith.mulf %246, %196 : vector<1x128xf32>
    %248 = arith.addf %245, %247 : vector<1x128xf32>
    %249 = vector.broadcast %52 : f32 to vector<1x128xf32>
    %250 = arith.mulf %249, %207 : vector<1x128xf32>
    %251 = arith.addf %248, %250 : vector<1x128xf32>
    %252 = vector.broadcast %53 : f32 to vector<1x128xf32>
    %253 = arith.mulf %252, %218 : vector<1x128xf32>
    %254 = arith.addf %251, %253 : vector<1x128xf32>
    %255 = math.exp %254 : vector<1x128xf32>
    %c1_167 = arith.constant 1 : index
    %c0_168 = arith.constant 0 : index
    %c0_169 = arith.constant 0 : index
    %256 = vector.load %arg9[%c1_167, %c0_168, %c0_169] : memref<6x1x128xf32, #tpu.memory_space<vmem>>, vector<1x1x128xf32>
    %257 = vector.shape_cast %256 : vector<1x1x128xf32> to vector<1x128xf32>
    %258 = vector.shape_cast %255 : vector<1x128xf32> to vector<1x1x128xf32>
    tpu.vector_store %arg9[%c1_167, %c0_168, %c0_169], %258 {strides = array<i32>} : memref<6x1x128xf32, #tpu.memory_space<vmem>>, vector<1x1x128xf32>,
    %259 = vector.broadcast %54 : f32 to vector<1x128xf32>
    %260 = arith.mulf %259, %174 : vector<1x128xf32>
    %261 = vector.broadcast %76 : f32 to vector<1x128xf32>
    %262 = arith.addf %261, %260 : vector<1x128xf32>
    %263 = vector.broadcast %55 : f32 to vector<1x128xf32>
    %264 = arith.mulf %263, %185 : vector<1x128xf32>
    %265 = arith.addf %262, %264 : vector<1x128xf32>
    %266 = vector.broadcast %56 : f32 to vector<1x128xf32>
    %267 = arith.mulf %266, %196 : vector<1x128xf32>
    %268 = arith.addf %265, %267 : vector<1x128xf32>
    %269 = vector.broadcast %57 : f32 to vector<1x128xf32>
    %270 = arith.mulf %269, %207 : vector<1x128xf32>
    %271 = arith.addf %268, %270 : vector<1x128xf32>
    %272 = vector.broadcast %58 : f32 to vector<1x128xf32>
    %273 = arith.mulf %272, %218 : vector<1x128xf32>
    %274 = arith.addf %271, %273 : vector<1x128xf32>
    %275 = math.exp %274 : vector<1x128xf32>
    %c2_170 = arith.constant 2 : index
    %c0_171 = arith.constant 0 : index
    %c0_172 = arith.constant 0 : index
    %276 = vector.load %arg9[%c2_170, %c0_171, %c0_172] : memref<6x1x128xf32, #tpu.memory_space<vmem>>, vector<1x1x128xf32>
    %277 = vector.shape_cast %276 : vector<1x1x128xf32> to vector<1x128xf32>
    %278 = vector.shape_cast %275 : vector<1x128xf32> to vector<1x1x128xf32>
    tpu.vector_store %arg9[%c2_170, %c0_171, %c0_172], %278 {strides = array<i32>} : memref<6x1x128xf32, #tpu.memory_space<vmem>>, vector<1x1x128xf32>,
    %279 = vector.broadcast %59 : f32 to vector<1x128xf32>
    %280 = arith.mulf %279, %174 : vector<1x128xf32>
    %281 = vector.broadcast %77 : f32 to vector<1x128xf32>
    %282 = arith.addf %281, %280 : vector<1x128xf32>
    %283 = vector.broadcast %60 : f32 to vector<1x128xf32>
    %284 = arith.mulf %283, %185 : vector<1x128xf32>
    %285 = arith.addf %282, %284 : vector<1x128xf32>
    %286 = vector.broadcast %61 : f32 to vector<1x128xf32>
    %287 = arith.mulf %286, %196 : vector<1x128xf32>
    %288 = arith.addf %285, %287 : vector<1x128xf32>
    %289 = vector.broadcast %62 : f32 to vector<1x128xf32>
    %290 = arith.mulf %289, %207 : vector<1x128xf32>
    %291 = arith.addf %288, %290 : vector<1x128xf32>
    %292 = vector.broadcast %63 : f32 to vector<1x128xf32>
    %293 = arith.mulf %292, %218 : vector<1x128xf32>
    %294 = arith.addf %291, %293 : vector<1x128xf32>
    %295 = math.exp %294 : vector<1x128xf32>
    %c3_173 = arith.constant 3 : index
    %c0_174 = arith.constant 0 : index
    %c0_175 = arith.constant 0 : index
    %296 = vector.load %arg9[%c3_173, %c0_174, %c0_175] : memref<6x1x128xf32, #tpu.memory_space<vmem>>, vector<1x1x128xf32>
    %297 = vector.shape_cast %296 : vector<1x1x128xf32> to vector<1x128xf32>
    %298 = vector.shape_cast %295 : vector<1x128xf32> to vector<1x1x128xf32>
    tpu.vector_store %arg9[%c3_173, %c0_174, %c0_175], %298 {strides = array<i32>} : memref<6x1x128xf32, #tpu.memory_space<vmem>>, vector<1x1x128xf32>,
    %299 = vector.broadcast %64 : f32 to vector<1x128xf32>
    %300 = arith.mulf %299, %174 : vector<1x128xf32>
    %301 = vector.broadcast %78 : f32 to vector<1x128xf32>
    %302 = arith.addf %301, %300 : vector<1x128xf32>
    %303 = vector.broadcast %65 : f32 to vector<1x128xf32>
    %304 = arith.mulf %303, %185 : vector<1x128xf32>
    %305 = arith.addf %302, %304 : vector<1x128xf32>
    %306 = vector.broadcast %66 : f32 to vector<1x128xf32>
    %307 = arith.mulf %306, %196 : vector<1x128xf32>
    %308 = arith.addf %305, %307 : vector<1x128xf32>
    %309 = vector.broadcast %67 : f32 to vector<1x128xf32>
    %310 = arith.mulf %309, %207 : vector<1x128xf32>
    %311 = arith.addf %308, %310 : vector<1x128xf32>
    %312 = vector.broadcast %68 : f32 to vector<1x128xf32>
    %313 = arith.mulf %312, %218 : vector<1x128xf32>
    %314 = arith.addf %311, %313 : vector<1x128xf32>
    %315 = math.exp %314 : vector<1x128xf32>
    %c4_176 = arith.constant 4 : index
    %c0_177 = arith.constant 0 : index
    %c0_178 = arith.constant 0 : index
    %316 = vector.load %arg9[%c4_176, %c0_177, %c0_178] : memref<6x1x128xf32, #tpu.memory_space<vmem>>, vector<1x1x128xf32>
    %317 = vector.shape_cast %316 : vector<1x1x128xf32> to vector<1x128xf32>
    %318 = vector.shape_cast %315 : vector<1x128xf32> to vector<1x1x128xf32>
    tpu.vector_store %arg9[%c4_176, %c0_177, %c0_178], %318 {strides = array<i32>} : memref<6x1x128xf32, #tpu.memory_space<vmem>>, vector<1x1x128xf32>,
    %319 = vector.broadcast %69 : f32 to vector<1x128xf32>
    %320 = arith.mulf %319, %174 : vector<1x128xf32>
    %321 = vector.broadcast %79 : f32 to vector<1x128xf32>
    %322 = arith.addf %321, %320 : vector<1x128xf32>
    %323 = vector.broadcast %70 : f32 to vector<1x128xf32>
    %324 = arith.mulf %323, %185 : vector<1x128xf32>
    %325 = arith.addf %322, %324 : vector<1x128xf32>
    %326 = vector.broadcast %71 : f32 to vector<1x128xf32>
    %327 = arith.mulf %326, %196 : vector<1x128xf32>
    %328 = arith.addf %325, %327 : vector<1x128xf32>
    %329 = vector.broadcast %72 : f32 to vector<1x128xf32>
    %330 = arith.mulf %329, %207 : vector<1x128xf32>
    %331 = arith.addf %328, %330 : vector<1x128xf32>
    %332 = vector.broadcast %73 : f32 to vector<1x128xf32>
    %333 = arith.mulf %332, %218 : vector<1x128xf32>
    %334 = arith.addf %331, %333 : vector<1x128xf32>
    %335 = math.exp %334 : vector<1x128xf32>
    %c5_179 = arith.constant 5 : index
    %c0_180 = arith.constant 0 : index
    %c0_181 = arith.constant 0 : index
    %336 = vector.load %arg9[%c5_179, %c0_180, %c0_181] : memref<6x1x128xf32, #tpu.memory_space<vmem>>, vector<1x1x128xf32>
    %337 = vector.shape_cast %336 : vector<1x1x128xf32> to vector<1x128xf32>
    %338 = vector.shape_cast %335 : vector<1x128xf32> to vector<1x1x128xf32>
    tpu.vector_store %arg9[%c5_179, %c0_180, %c0_181], %338 {strides = array<i32>} : memref<6x1x128xf32, #tpu.memory_space<vmem>>, vector<1x1x128xf32>,
    return
  }
  func.func @transform_0(%arg0: i32) -> (i32, i32) {
    %c0_i32 = arith.constant 0 : i32
    %c0_i32_0 = arith.constant 0 : i32
    %c0_i32_1 = arith.constant 0 : i32
    return %c0_i32, %c0_i32_0 : i32, i32
  }
  func.func @transform_1(%arg0: i32) -> i32 {
    %c0_i32 = arith.constant 0 : i32
    %c0_i32_0 = arith.constant 0 : i32
    return %c0_i32 : i32
  }
  func.func @transform_2(%arg0: i32) -> (i32, i32) {
    %c0_i32 = arith.constant 0 : i32
    %c0_i32_0 = arith.constant 0 : i32
    %c0_i32_1 = arith.constant 0 : i32
    return %c0_i32, %c0_i32_0 : i32, i32
  }
  func.func @transform_3(%arg0: i32) -> i32 {
    %c0_i32 = arith.constant 0 : i32
    %c0_i32_0 = arith.constant 0 : i32
    return %c0_i32 : i32
  }
  func.func @transform_4(%arg0: i32) -> (i32, i32) {
    %c0_i32 = arith.constant 0 : i32
    %c0_i32_0 = arith.constant 0 : i32
    %c0_i32_1 = arith.constant 0 : i32
    return %c0_i32, %c0_i32_0 : i32, i32
  }
  func.func @transform_5(%arg0: i32) -> i32 {
    %c0_i32 = arith.constant 0 : i32
    %c0_i32_0 = arith.constant 0 : i32
    return %c0_i32 : i32
  }
  func.func @transform_6(%arg0: i32) -> (i32, i32, i32) {
    %c0_i32 = arith.constant 0 : i32
    %c0_i32_0 = arith.constant 0 : i32
    %c0_i32_1 = arith.constant 0 : i32
    return %c0_i32, %arg0, %c0_i32_0 : i32, i32, i32
  }
  func.func @transform_7(%arg0: i32) -> (i32, i32, i32) {
    %c0_i32 = arith.constant 0 : i32
    %c0_i32_0 = arith.constant 0 : i32
    %c0_i32_1 = arith.constant 0 : i32
    return %c0_i32, %arg0, %c0_i32_0 : i32, i32, i32
  }
  func.func @transform_8(%arg0: i32) -> (i32, i32, i32) {
    %c0_i32 = arith.constant 0 : i32
    %c0_i32_0 = arith.constant 0 : i32
    %c0_i32_1 = arith.constant 0 : i32
    return %c0_i32, %arg0, %c0_i32_0 : i32, i32, i32
  }
}

</mosaic_0001>

<llo_original>
// kernel: encoder_c_forward.1
$region0: #{encoder_c_forward.1}
  #allocation0 [shape = 'u32[]', space=smem, size = 0x4, offset = 0x4, fixed_abs, tag = 'smem constant byte address 0x4 - core index']
  #allocation1 [shape = 'u32[144,128]{1,0:T(1,128)}', space=vmem, size = 0x12000, scoped, tag = 'internal scratch']
  %s0 = inlined_call_operand.vmem [shape: f32[6,3], index: 0, kind: input, shape index: {}]
  %s1 = inlined_call_operand.vmem [shape: f32[6], index: 1, kind: input, shape index: {}]
  %s2 = inlined_call_operand.vmem [shape: f32[5,3], index: 2, kind: input, shape index: {}]
  %s3 = inlined_call_operand.vmem [shape: f32[5], index: 3, kind: input, shape index: {}]
  %s4 = inlined_call_operand.vmem [shape: f32[6,5], index: 4, kind: input, shape index: {}]
  %s5 = inlined_call_operand.vmem [shape: f32[6], index: 5, kind: input, shape index: {}]
  %s6 = inlined_call_operand.vmem [shape: f32[3,1,128], index: 6, kind: input, shape index: {}]
  %s7 = inlined_call_operand.vmem [shape: f32[6,1,128], index: 7, kind: output, shape index: {0}]
  %s8 = inlined_call_operand.vmem [shape: f32[6,1,128], index: 8, kind: output, shape index: {1}]
  %9 = xla_tuple %s7, %s8
  %s10 = sld [smem:[#allocation0]]
  $region70: #{encoder_c_forward.1} parent=0
    _
  %s12 = ssub.s32 1, %s10
  %s13 = scalar_select 0, %s12, %s10
  $region1: #{encoder_c_forward.1} parent=0
    #allocation2 [shape = 'u8[4096]{0}', space=smem, size = 0x1000, scoped, tag = 'input window, operand 0, single buffered']
    #allocation3 [shape = 's32[1]{0}', space=sflag, size = 0x4, scoped, tag = 'scoped memory for encoder_c_forward.1']
    #allocation4 [shape = 'u8[512]{0}', space=smem, size = 0x200, scoped, tag = 'input window, operand 1, single buffered']
    #allocation5 [shape = 's32[1]{0}', space=sflag, size = 0x4, scoped, tag = 'scoped memory for encoder_c_forward.1']
    #allocation6 [shape = 'u8[4096]{0}', space=smem, size = 0x1000, scoped, tag = 'input window, operand 2, single buffered']
    #allocation7 [shape = 'u8[512]{0}', space=smem, size = 0x200, scoped, tag = 'input window, operand 3, single buffered']
    #allocation8 [shape = 's32[1]{0}', space=sflag, size = 0x4, scoped, tag = 'scoped memory for encoder_c_forward.1']
    #allocation9 [shape = 'u8[4096]{0}', space=smem, size = 0x1000, scoped, tag = 'input window, operand 4, single buffered']
    #allocation10 [shape = 'u8[512]{0}', space=smem, size = 0x200, scoped, tag = 'input window, operand 5, single buffered']
    #allocation11 [shape = 's32[1]{0}', space=sflag, size = 0x4, scoped, tag = 'scoped memory for encoder_c_forward.1']
    %14 = vsyncpa [#allocation3], 0
    %15 = vsyncpa [#allocation5], 0
    %16 = vsyncpa [#allocation8], 0
    %17 = vsyncpa [#allocation11], 0
    // Predicated region
    $region2: #{encoder_c_forward.1} parent=1 // pred_check
      _
    $region3: #{encoder_c_forward.1} parent=1 // pred_check_branch
      %19 = sbr.rel (0) target = $region5
    $region4: #{encoder_c_forward.1} parent=1 // pred_region
      %s21 = ssub.s32 128, 128
      %22 = vsyncadd [#allocation3], %s21
      %s24 = sshll.u32 %s0, 4
      %s25 = int_to_ptr.vmem [resolvable:$true] %s24
      %27 = dma.vmem_to_smem %s25, 128, [#allocation2], [#allocation3]
    $region5: #{encoder_c_forward.1} parent=1 // pred_fallthru
      _
    // Predicated region
    $region6: #{encoder_c_forward.1} parent=1 // pred_check
      _
    $region7: #{encoder_c_forward.1} parent=1 // pred_check_branch
      %29 = sbr.rel (0) target = $region9
    $region8: #{encoder_c_forward.1} parent=1 // pred_region
      %s31 = ssub.s32 16, 16
      %32 = vsyncadd [#allocation5], %s31
      %s34 = sshll.u32 %s1, 4
      %s35 = int_to_ptr.vmem [resolvable:$true] %s34
      %37 = dma.vmem_to_smem %s35, 16, [#allocation4], [#allocation5]
    $region9: #{encoder_c_forward.1} parent=1 // pred_fallthru
      _
    // Predicated region
    $region10: #{encoder_c_forward.1} parent=1 // pred_check
      _
    $region11: #{encoder_c_forward.1} parent=1 // pred_check_branch
      %39 = sbr.rel (0) target = $region13
    $region12: #{encoder_c_forward.1} parent=1 // pred_region
      %s41 = ssub.s32 128, 128
      %42 = vsyncadd [#allocation5], %s41
      %s44 = sshll.u32 %s2, 4
      %s45 = int_to_ptr.vmem [resolvable:$true] %s44
      %47 = dma.vmem_to_smem %s45, 128, [#allocation6], [#allocation5]
    $region13: #{encoder_c_forward.1} parent=1 // pred_fallthru
      _
    // Predicated region
    $region14: #{encoder_c_forward.1} parent=1 // pred_check
      _
    $region15: #{encoder_c_forward.1} parent=1 // pred_check_branch
      %49 = sbr.rel (0) target = $region17
    $region16: #{encoder_c_forward.1} parent=1 // pred_region
      %s51 = ssub.s32 16, 16
      %52 = vsyncadd [#allocation8], %s51
      %s54 = sshll.u32 %s3, 4
      %s55 = int_to_ptr.vmem [resolvable:$true] %s54
      %57 = dma.vmem_to_smem %s55, 16, [#allocation7], [#allocation8]
    $region17: #{encoder_c_forward.1} parent=1 // pred_fallthru
      _
    // Predicated region
    $region18: #{encoder_c_forward.1} parent=1 // pred_check
      _
    $region19: #{encoder_c_forward.1} parent=1 // pred_check_branch
      %59 = sbr.rel (0) target = $region21
    $region20: #{encoder_c_forward.1} parent=1 // pred_region
      %s61 = ssub.s32 128, 128
      %62 = vsyncadd [#allocation8], %s61
      %s64 = sshll.u32 %s4, 4
      %s65 = int_to_ptr.vmem [resolvable:$true] %s64
      %67 = dma.vmem_to_smem %s65, 128, [#allocation9], [#allocation8]
    $region21: #{encoder_c_forward.1} parent=1 // pred_fallthru
      _
    // Predicated region
    $region22: #{encoder_c_forward.1} parent=1 // pred_check
      _
    $region23: #{encoder_c_forward.1} parent=1 // pred_check_branch
      %69 = sbr.rel (0) target = $region25
    $region24: #{encoder_c_forward.1} parent=1 // pred_region
      %s71 = ssub.s32 16, 16
      %72 = vsyncadd [#allocation11], %s71
      %s74 = sshll.u32 %s5, 4
      %s75 = int_to_ptr.vmem [resolvable:$true] %s74
      %77 = dma.vmem_to_smem %s75, 16, [#allocation10], [#allocation11]
    $region25: #{encoder_c_forward.1} parent=1 // pred_fallthru
      _
    // Predicated region
    $region26: #{encoder_c_forward.1} parent=1 // pred_check
      _
    $region27: #{encoder_c_forward.1} parent=1 // pred_check_branch
      %79 = sbr.rel (0) target = $region29
    $region28: #{encoder_c_forward.1} parent=1 // pred_region
      _
    $region29: #{encoder_c_forward.1} parent=1 // pred_fallthru
      _
    // Predicated region
    $region30: #{encoder_c_forward.1} parent=1 // pred_check
      _
    $region31: #{encoder_c_forward.1} parent=1 // pred_check_branch
      %81 = sbr.rel (0) target = $region33
    $region32: #{encoder_c_forward.1} parent=1 // pred_region
      %82 = dma.done [#allocation3], 128
    $region33: #{encoder_c_forward.1} parent=1 // pred_fallthru
      _
    // Predicated region
    $region34: #{encoder_c_forward.1} parent=1 // pred_check
      _
    $region35: #{encoder_c_forward.1} parent=1 // pred_check_branch
      %84 = sbr.rel (0) target = $region37
    $region36: #{encoder_c_forward.1} parent=1 // pred_region
      %85 = dma.done [#allocation5], 16
    $region37: #{encoder_c_forward.1} parent=1 // pred_fallthru
      _
    // Predicated region
    $region38: #{encoder_c_forward.1} parent=1 // pred_check
      _
    $region39: #{encoder_c_forward.1} parent=1 // pred_check_branch
      %87 = sbr.rel (0) target = $region41
    $region40: #{encoder_c_forward.1} parent=1 // pred_region
      %88 = dma.done [#allocation5], 128
    $region41: #{encoder_c_forward.1} parent=1 // pred_fallthru
      _
    // Predicated region
    $region42: #{encoder_c_forward.1} parent=1 // pred_check
      _
    $region43: #{encoder_c_forward.1} parent=1 // pred_check_branch
      %90 = sbr.rel (0) target = $region45
    $region44: #{encoder_c_forward.1} parent=1 // pred_region
      %91 = dma.done [#allocation8], 16
    $region45: #{encoder_c_forward.1} parent=1 // pred_fallthru
      _
    // Predicated region
    $region46: #{encoder_c_forward.1} parent=1 // pred_check
      _
    $region47: #{encoder_c_forward.1} parent=1 // pred_check_branch
      %93 = sbr.rel (0) target = $region49
    $region48: #{encoder_c_forward.1} parent=1 // pred_region
      %94 = dma.done [#allocation8], 128
    $region49: #{encoder_c_forward.1} parent=1 // pred_fallthru
      _
    // Predicated region
    $region50: #{encoder_c_forward.1} parent=1 // pred_check
      _
    $region51: #{encoder_c_forward.1} parent=1 // pred_check_branch
      %96 = sbr.rel (0) target = $region53
    $region52: #{encoder_c_forward.1} parent=1 // pred_region
      %97 = dma.done [#allocation11], 16
    $region53: #{encoder_c_forward.1} parent=1 // pred_fallthru
      _
    %98 = sfence
    %s99 = sld [smem:[#allocation2]]
    %s100 = sld [smem:[#allocation2 + $0x1]]
    %s101 = sld [smem:[#allocation2 + $0x2]]
    %s102 = sld [smem:[#allocation2 + $0x80]]
    %s103 = sld [smem:[#allocation2 + $0x81]]
    %s104 = sld [smem:[#allocation2 + $0x82]]
    %s105 = sld [smem:[#allocation2 + $0x100]]
    %s106 = sld [smem:[#allocation2 + $0x101]]
    %s107 = sld [smem:[#allocation2 + $0x102]]
    %s108 = sld [smem:[#allocation2 + $0x180]]
    %s109 = sld [smem:[#allocation2 + $0x181]]
    %s110 = sld [smem:[#allocation2 + $0x182]]
    %s111 = sld [smem:[#allocation2 + $0x200]]
    %s112 = sld [smem:[#allocation2 + $0x201]]
    %s113 = sld [smem:[#allocation2 + $0x202]]
    %s114 = sld [smem:[#allocation2 + $0x280]]
    %s115 = sld [smem:[#allocation2 + $0x281]]
    %s116 = sld [smem:[#allocation2 + $0x282]]
    %s117 = sld [smem:[#allocation4]]
    %s118 = sld [smem:[#allocation4 + $0x1]]
    %s119 = sld [smem:[#allocation4 + $0x2]]
    %s120 = sld [smem:[#allocation4 + $0x3]]
    %s121 = sld [smem:[#allocation4 + $0x4]]
    %s122 = sld [smem:[#allocation4 + $0x5]]
    %s123 = sld [smem:[#allocation6]]
    %s124 = sld [smem:[#allocation6 + $0x1]]
    %s125 = sld [smem:[#allocation6 + $0x2]]
    %s126 = sld [smem:[#allocation6 + $0x80]]
    %s127 = sld [smem:[#allocation6 + $0x81]]
    %s128 = sld [smem:[#allocation6 + $0x82]]
    %s129 = sld [smem:[#allocation6 + $0x100]]
    %s130 = sld [smem:[#allocation6 + $0x101]]
    %s131 = sld [smem:[#allocation6 + $0x102]]
    %s132 = sld [smem:[#allocation6 + $0x180]]
    %s133 = sld [smem:[#allocation6 + $0x181]]
    %s134 = sld [smem:[#allocation6 + $0x182]]
    %s135 = sld [smem:[#allocation6 + $0x200]]
    %s136 = sld [smem:[#allocation6 + $0x201]]
    %s137 = sld [smem:[#allocation6 + $0x202]]
    %s138 = sld [smem:[#allocation7]]
    %s139 = sld [smem:[#allocation7 + $0x1]]
    %s140 = sld [smem:[#allocation7 + $0x2]]
    %s141 = sld [smem:[#allocation7 + $0x3]]
    %s142 = sld [smem:[#allocation7 + $0x4]]
    %s143 = sld [smem:[#allocation9]]
    %s144 = sld [smem:[#allocation9 + $0x1]]
    %s145 = sld [smem:[#allocation9 + $0x2]]
    %s146 = sld [smem:[#allocation9 + $0x3]]
    %s147 = sld [smem:[#allocation9 + $0x4]]
    %s148 = sld [smem:[#allocation9 + $0x80]]
    %s149 = sld [smem:[#allocation9 + $0x81]]
    %s150 = sld [smem:[#allocation9 + $0x82]]
    %s151 = sld [smem:[#allocation9 + $0x83]]
    %s152 = sld [smem:[#allocation9 + $0x84]]
    %s153 = sld [smem:[#allocation9 + $0x100]]
    %s154 = sld [smem:[#allocation9 + $0x101]]
    %s155 = sld [smem:[#allocation9 + $0x102]]
    %s156 = sld [smem:[#allocation9 + $0x103]]
    %s157 = sld [smem:[#allocation9 + $0x104]]
    %s158 = sld [smem:[#allocation9 + $0x180]]
    %s159 = sld [smem:[#allocation9 + $0x181]]
    %s160 = sld [smem:[#allocation9 + $0x182]]
    %s161 = sld [smem:[#allocation9 + $0x183]]
    %s162 = sld [smem:[#allocation9 + $0x184]]
    %s163 = sld [smem:[#allocation9 + $0x200]]
    %s164 = sld [smem:[#allocation9 + $0x201]]
    %s165 = sld [smem:[#allocation9 + $0x202]]
    %s166 = sld [smem:[#allocation9 + $0x203]]
    %s167 = sld [smem:[#allocation9 + $0x204]]
    %s168 = sld [smem:[#allocation9 + $0x280]]
    %s169 = sld [smem:[#allocation9 + $0x281]]
    %s170 = sld [smem:[#allocation9 + $0x282]]
    %s171 = sld [smem:[#allocation9 + $0x283]]
    %s172 = sld [smem:[#allocation9 + $0x284]]
    %s173 = sld [smem:[#allocation10]]
    %s174 = sld [smem:[#allocation10 + $0x1]]
    %s175 = sld [smem:[#allocation10 + $0x2]]
    %s176 = sld [smem:[#allocation10 + $0x3]]
    %s177 = sld [smem:[#allocation10 + $0x4]]
    %s178 = sld [smem:[#allocation10 + $0x5]]
    %v179 = vld [vmem:[%s6] sm:$0x1]
    %s180 = scalar_lea.vmem %s6, 1
    %v181 = vld [vmem:[%s180] sm:$0x1]
    %s182 = scalar_lea.vmem %s6, 2
    %v183 = vld [vmem:[%s182] sm:$0x1]
    %v184 = vstv %s99
    %v185 = vmul.f32 %v184, %v179
    %v186 = vstv %s117
    %v187 = vadd.f32 %v186, %v185
    %v188 = vstv %s100
    %v189 = vmul.f32 %v188, %v181
    %v190 = vadd.f32 %v187, %v189
    %v191 = vstv %s101
    %v192 = vmul.f32 %v191, %v183
    %v193 = vadd.f32 %v190, %v192
    %194 = vst [vmem:[%s7] sm:$0x1] %v193
    %v195 = vstv %s102
    %v196 = vmul.f32 %v195, %v179
    %v197 = vstv %s118
    %v198 = vadd.f32 %v197, %v196
    %v199 = vstv %s103
    %v200 = vmul.f32 %v199, %v181
    %v201 = vadd.f32 %v198, %v200
    %v202 = vstv %s104
    %v203 = vmul.f32 %v202, %v183
    %v204 = vadd.f32 %v201, %v203
    %s205 = scalar_lea.vmem %s7, 1
    %206 = vst [vmem:[%s205] sm:$0x1] %v204
    %v207 = vstv %s105
    %v208 = vmul.f32 %v207, %v179
    %v209 = vstv %s119
    %v210 = vadd.f32 %v209, %v208
    %v211 = vstv %s106
    %v212 = vmul.f32 %v211, %v181
    %v213 = vadd.f32 %v210, %v212
    %v214 = vstv %s107
    %v215 = vmul.f32 %v214, %v183
    %v216 = vadd.f32 %v213, %v215
    %s217 = scalar_lea.vmem %s7, 2
    %218 = vst [vmem:[%s217] sm:$0x1] %v216
    %v219 = vstv %s108
    %v220 = vmul.f32 %v219, %v179
    %v221 = vstv %s120
    %v222 = vadd.f32 %v221, %v220
    %v223 = vstv %s109
    %v224 = vmul.f32 %v223, %v181
    %v225 = vadd.f32 %v222, %v224
    %v226 = vstv %s110
    %v227 = vmul.f32 %v226, %v183
    %v228 = vadd.f32 %v225, %v227
    %s229 = scalar_lea.vmem %s7, 3
    %230 = vst [vmem:[%s229] sm:$0x1] %v228
    %v231 = vstv %s111
    %v232 = vmul.f32 %v231, %v179
    %v233 = vstv %s121
    %v234 = vadd.f32 %v233, %v232
    %v235 = vstv %s112
    %v236 = vmul.f32 %v235, %v181
    %v237 = vadd.f32 %v234, %v236
    %v238 = vstv %s113
    %v239 = vmul.f32 %v238, %v183
    %v240 = vadd.f32 %v237, %v239
    %s241 = scalar_lea.vmem %s7, 4
    %242 = vst [vmem:[%s241] sm:$0x1] %v240
    %v243 = vstv %s114
    %v244 = vmul.f32 %v243, %v179
    %v245 = vstv %s122
    %v246 = vadd.f32 %v245, %v244
    %v247 = vstv %s115
    %v248 = vmul.f32 %v247, %v181
    %v249 = vadd.f32 %v246, %v248
    %v250 = vstv %s116
    %v251 = vmul.f32 %v250, %v183
    %v252 = vadd.f32 %v249, %v251
    %s253 = scalar_lea.vmem %s7, 5
    %254 = vst [vmem:[%s253] sm:$0x1] %v252
    %v255 = vstv %s123
    %v256 = vmul.f32 %v255, %v179
    %v257 = vstv %s138
    %v258 = vadd.f32 %v257, %v256
    %v259 = vstv %s124
    %v260 = vmul.f32 %v259, %v181
    %v261 = vadd.f32 %v258, %v260
    %v262 = vstv %s125
    %v263 = vmul.f32 %v262, %v183
    %v264 = vadd.f32 %v261, %v263
    %v265 = vtanh.pop %v264
    %v266 = vstv %s126
    %v267 = vmul.f32 %v266, %v179
    %v268 = vstv %s139
    %v269 = vadd.f32 %v268, %v267
    %v270 = vstv %s127
    %v271 = vmul.f32 %v270, %v181
    %v272 = vadd.f32 %v269, %v271
    %v273 = vstv %s128
    %v274 = vmul.f32 %v273, %v183
    %v275 = vadd.f32 %v272, %v274
    %v276 = vtanh.pop %v275
    %v277 = vstv %s129
    %v278 = vmul.f32 %v277, %v179
    %v279 = vstv %s140
    %v280 = vadd.f32 %v279, %v278
    %v281 = vstv %s130
    %v282 = vmul.f32 %v281, %v181
    %v283 = vadd.f32 %v280, %v282
    %v284 = vstv %s131
    %v285 = vmul.f32 %v284, %v183
    %v286 = vadd.f32 %v283, %v285
    %v287 = vtanh.pop %v286
    %v288 = vstv %s132
    %v289 = vmul.f32 %v288, %v179
    %v290 = vstv %s141
    %v291 = vadd.f32 %v290, %v289
    %v292 = vstv %s133
    %v293 = vmul.f32 %v292, %v181
    %v294 = vadd.f32 %v291, %v293
    %v295 = vstv %s134
    %v296 = vmul.f32 %v295, %v183
    %v297 = vadd.f32 %v294, %v296
    %v298 = vtanh.pop %v297
    %v299 = vstv %s135
    %v300 = vmul.f32 %v299, %v179
    %v301 = vstv %s142
    %v302 = vadd.f32 %v301, %v300
    %v303 = vstv %s136
    %v304 = vmul.f32 %v303, %v181
    %v305 = vadd.f32 %v302, %v304
    %v306 = vstv %s137
    %v307 = vmul.f32 %v306, %v183
    %v308 = vadd.f32 %v305, %v307
    %v309 = vtanh.pop %v308
    %v310 = vstv %s143
    %v311 = vmul.f32 %v310, %v265
    %v312 = vstv %s173
    %v313 = vadd.f32 %v312, %v311
    %v314 = vstv %s144
    %v315 = vmul.f32 %v314, %v276
    %v316 = vadd.f32 %v313, %v315
    %v317 = vstv %s145
    %v318 = vmul.f32 %v317, %v287
    %v319 = vadd.f32 %v316, %v318
    %v320 = vstv %s146
    %v321 = vmul.f32 %v320, %v298
    %v322 = vadd.f32 %v319, %v321
    %v323 = vstv %s147
    %v324 = vmul.f32 %v323, %v309
    %v325 = vadd.f32 %v322, %v324
    %v326 = vmul.f32 %v325, 1.442695
    %v327 = vpow.pop %v326
    %328 = vst [vmem:[%s8] sm:$0x1] %v327
    %v329 = vstv %s148
    %v330 = vmul.f32 %v329, %v265
    %v331 = vstv %s174
    %v332 = vadd.f32 %v331, %v330
    %v333 = vstv %s149
    %v334 = vmul.f32 %v333, %v276
    %v335 = vadd.f32 %v332, %v334
    %v336 = vstv %s150
    %v337 = vmul.f32 %v336, %v287
    %v338 = vadd.f32 %v335, %v337
    %v339 = vstv %s151
    %v340 = vmul.f32 %v339, %v298
    %v341 = vadd.f32 %v338, %v340
    %v342 = vstv %s152
    %v343 = vmul.f32 %v342, %v309
    %v344 = vadd.f32 %v341, %v343
    %v345 = vmul.f32 %v344, 1.442695
    %v346 = vpow.pop %v345
    %s347 = scalar_lea.vmem %s8, 1
    %348 = vst [vmem:[%s347] sm:$0x1] %v346
    %v349 = vstv %s153
    %v350 = vmul.f32 %v349, %v265
    %v351 = vstv %s175
    %v352 = vadd.f32 %v351, %v350
    %v353 = vstv %s154
    %v354 = vmul.f32 %v353, %v276
    %v355 = vadd.f32 %v352, %v354
    %v356 = vstv %s155
    %v357 = vmul.f32 %v356, %v287
    %v358 = vadd.f32 %v355, %v357
    %v359 = vstv %s156
    %v360 = vmul.f32 %v359, %v298
    %v361 = vadd.f32 %v358, %v360
    %v362 = vstv %s157
    %v363 = vmul.f32 %v362, %v309
    %v364 = vadd.f32 %v361, %v363
    %v365 = vmul.f32 %v364, 1.442695
    %v366 = vpow.pop %v365
    %s367 = scalar_lea.vmem %s8, 2
    %368 = vst [vmem:[%s367] sm:$0x1] %v366
    %v369 = vstv %s158
    %v370 = vmul.f32 %v369, %v265
    %v371 = vstv %s176
    %v372 = vadd.f32 %v371, %v370
    %v373 = vstv %s159
    %v374 = vmul.f32 %v373, %v276
    %v375 = vadd.f32 %v372, %v374
    %v376 = vstv %s160
    %v377 = vmul.f32 %v376, %v287
    %v378 = vadd.f32 %v375, %v377
    %v379 = vstv %s161
    %v380 = vmul.f32 %v379, %v298
    %v381 = vadd.f32 %v378, %v380
    %v382 = vstv %s162
    %v383 = vmul.f32 %v382, %v309
    %v384 = vadd.f32 %v381, %v383
    %v385 = vmul.f32 %v384, 1.442695
    %v386 = vpow.pop %v385
    %s387 = scalar_lea.vmem %s8, 3
    %388 = vst [vmem:[%s387] sm:$0x1] %v386
    %v389 = vstv %s163
    %v390 = vmul.f32 %v389, %v265
    %v391 = vstv %s177
    %v392 = vadd.f32 %v391, %v390
    %v393 = vstv %s164
    %v394 = vmul.f32 %v393, %v276
    %v395 = vadd.f32 %v392, %v394
    %v396 = vstv %s165
    %v397 = vmul.f32 %v396, %v287
    %v398 = vadd.f32 %v395, %v397
    %v399 = vstv %s166
    %v400 = vmul.f32 %v399, %v298
    %v401 = vadd.f32 %v398, %v400
    %v402 = vstv %s167
    %v403 = vmul.f32 %v402, %v309
    %v404 = vadd.f32 %v401, %v403
    %v405 = vmul.f32 %v404, 1.442695
    %v406 = vpow.pop %v405
    %s407 = scalar_lea.vmem %s8, 4
    %408 = vst [vmem:[%s407] sm:$0x1] %v406
    %v409 = vstv %s168
    %v410 = vmul.f32 %v409, %v265
    %v411 = vstv %s178
    %v412 = vadd.f32 %v411, %v410
    %v413 = vstv %s169
    %v414 = vmul.f32 %v413, %v276
    %v415 = vadd.f32 %v412, %v414
    %v416 = vstv %s170
    %v417 = vmul.f32 %v416, %v287
    %v418 = vadd.f32 %v415, %v417
    %v419 = vstv %s171
    %v420 = vmul.f32 %v419, %v298
    %v421 = vadd.f32 %v418, %v420
    %v422 = vstv %s172
    %v423 = vmul.f32 %v422, %v309
    %v424 = vadd.f32 %v421, %v423
    %v425 = vmul.f32 %v424, 1.442695
    %v426 = vpow.pop %v425
    %s427 = scalar_lea.vmem %s8, 5
    %428 = vst [vmem:[%s427] sm:$0x1] %v426
    // Predicated region
    $region54: #{encoder_c_forward.1} parent=1 // pred_check
      _
    $region55: #{encoder_c_forward.1} parent=1 // pred_check_branch
      %430 = sbr.rel (0) target = $region57
    $region56: #{encoder_c_forward.1} parent=1 // pred_region
      _
    $region57: #{encoder_c_forward.1} parent=1 // pred_fallthru
      _
    // Predicated region
    $region58: #{encoder_c_forward.1} parent=1 // pred_check
      _
    $region59: #{encoder_c_forward.1} parent=1 // pred_check_branch
      %432 = sbr.rel (0) target = $region61
    $region60: #{encoder_c_forward.1} parent=1 // pred_region
      _
    $region61: #{encoder_c_forward.1} parent=1 // pred_fallthru
      _
    // Predicated region
    $region62: #{encoder_c_forward.1} parent=1 // pred_check
      _
    $region63: #{encoder_c_forward.1} parent=1 // pred_check_branch
      %434 = sbr.rel (0) target = $region65
    $region64: #{encoder_c_forward.1} parent=1 // pred_region
      _
    $region65: #{encoder_c_forward.1} parent=1 // pred_fallthru
      _
    // Predicated region
    $region66: #{encoder_c_forward.1} parent=1 // pred_check
      _
    $region67: #{encoder_c_forward.1} parent=1 // pred_check_branch
      %436 = sbr.rel (0) target = $region69
    $region68: #{encoder_c_forward.1} parent=1 // pred_region
      _
    $region69: #{encoder_c_forward.1} parent=1 // pred_fallthru
      _
    %437 = vsyncpa [#allocation3], 1
    %438 = vsyncpa [#allocation5], 1
    %439 = vsyncpa [#allocation8], 1
    %440 = vsyncpa [#allocation11], 1

</llo_original>
